<compile_context>
chip_gen: v7x
topology: tpu7x:2x2x1
jax: 0.10.0
libtpu: 0.0.40
codegen_flags: <defaults>
</compile_context>

<pallas_src>
import functools

import jax
import jax.numpy as jnp
from jax.experimental import pallas as pl
from jax.experimental.pallas import tpu as pltpu


def _round_up(x, m):
    return (x + m - 1) // m * m


def encoder_kernel(x_ref, w_in_ref, w_heads_ref, eps_ref, out_ref, *, latent_p):
    # First layer: bf16 MXU matmul, f32 accumulation, f32 ReLU on the VPU.
    x = x_ref[...]                                               # [TB, Din_p] bf16
    h = jnp.dot(x, w_in_ref[...], preferred_element_type=jnp.float32)
    h = jnp.maximum(h, 0.0)

    # Both latent heads fused into a single lane-dense matmul: [TB, 2*Lp].
    heads = jnp.dot(h.astype(w_heads_ref.dtype), w_heads_ref[...],
                    preferred_element_type=jnp.float32)
    z_mean = heads[:, :latent_p]
    z_logvar = heads[:, latent_p:]

    # Reparametrization in f32 (exp goes to the EUP, runs in its own slot).
    z = z_mean + eps_ref[...] * jnp.exp(z_logvar * 0.5)

    # Lane-dense, 128-aligned stores into one concatenated output slab.
    out_ref[:, 0:latent_p] = z
    out_ref[:, latent_p:2 * latent_p] = z_mean
    out_ref[:, 2 * latent_p:3 * latent_p] = z_logvar


def encoder_forward(x, w_in, w_m, w_lv, eps, *, block_b=256):
    """x: [B, input_dim], w_in: [input_dim, hidden], w_m/w_lv: [hidden, latent],
    eps: [B, latent]. Returns (z, z_mean, z_logvar), each [B, latent] f32."""
    B, input_dim = x.shape
    hidden_dim = w_in.shape[1]
    latent_dim = w_m.shape[1]

    # Pad feature dims to the 128-lane boundary; pad batch to the batch tile.
    din_p = _round_up(input_dim, 128)
    h_p = _round_up(hidden_dim, 128)
    l_p = _round_up(latent_dim, 128)
    tb = block_b if B >= block_b else _round_up(B, 8)
    b_p = _round_up(B, tb)

    mm_dtype = jnp.bfloat16  # matmul inputs; accumulation stays f32

    x_p = jnp.zeros((b_p, din_p), mm_dtype).at[:B, :input_dim].set(
        x.astype(mm_dtype))
    w_in_p = jnp.zeros((din_p, h_p), mm_dtype).at[:input_dim, :hidden_dim].set(
        w_in.astype(mm_dtype))
    w_heads = jnp.zeros((h_p, 2 * l_p), mm_dtype)
    w_heads = w_heads.at[:hidden_dim, :latent_dim].set(w_m.astype(mm_dtype))
    w_heads = w_heads.at[:hidden_dim, l_p:l_p + latent_dim].set(
        w_lv.astype(mm_dtype))
    eps_p = jnp.zeros((b_p, l_p), jnp.float32).at[:B, :latent_dim].set(
        eps.astype(jnp.float32))

    kernel = functools.partial(encoder_kernel, latent_p=l_p)

    out = pl.pallas_call(
        kernel,
        out_shape=jax.ShapeDtypeStruct((b_p, 3 * l_p), jnp.float32),
        grid=(b_p // tb,),
        in_specs=[
            pl.BlockSpec((tb, din_p), lambda i: (i, 0)),       # x tile (pipelined)
            pl.BlockSpec((din_p, h_p), lambda i: (0, 0)),      # W_in, VMEM-resident
            pl.BlockSpec((h_p, 2 * l_p), lambda i: (0, 0)),    # W_heads, resident
            pl.BlockSpec((tb, l_p), lambda i: (i, 0)),         # eps tile
        ],
        out_specs=pl.BlockSpec((tb, 3 * l_p), lambda i: (i, 0)),
        compiler_params=pltpu.CompilerParams(
            dimension_semantics=("parallel",)),
    )(x_p, w_in_p, w_heads, eps_p)

    z = out[:B, 0:latent_dim]
    z_mean = out[:B, l_p:l_p + latent_dim]
    z_logvar = out[:B, 2 * l_p:2 * l_p + latent_dim]
    return z, z_mean, z_logvar


if __name__ == "__main__":
    # Small, deterministic synthetic setup (use_bias=False).
    batch, input_dim, hidden_dim, latent_dim = 8, 32, 32, 16

    key = jax.random.PRNGKey(0)
    k_x, k_w1, k_wm, k_wlv, k_eps = jax.random.split(key, 5)

    x = jax.random.normal(k_x, (batch, input_dim), dtype=jnp.float32)
    # Weights stored as [in, out] (i.e. PyTorch weight.T), deterministic init.
    w_in = jax.random.normal(k_w1, (input_dim, hidden_dim), dtype=jnp.float32) * 0.1
    w_m = jax.random.normal(k_wm, (hidden_dim, latent_dim), dtype=jnp.float32) * 0.1
    w_lv = jax.random.normal(k_wlv, (hidden_dim, latent_dim), dtype=jnp.float32) * 0.1
    # TODO(synk): eps is sampled host-side with jax.random instead of
    # torch.randn_like inside the module (same reparametrization semantics).
    eps = jax.random.normal(k_eps, (batch, latent_dim), dtype=jnp.float32)

    z, z_mean, z_logvar = encoder_forward(x, w_in, w_m, w_lv, eps)
    jax.block_until_ready((z, z_mean, z_logvar))

    # Pure-JAX f32 reference check (bf16 matmul inputs -> loosened tolerance).
    h_ref = jnp.maximum(x @ w_in, 0.0)
    zm_ref = h_ref @ w_m
    zlv_ref = h_ref @ w_lv
    z_ref = zm_ref + eps * jnp.exp(zlv_ref / 2.0)
    assert jnp.allclose(z_mean, zm_ref, atol=2e-2, rtol=2e-2)
    assert jnp.allclose(z_logvar, zlv_ref, atol=2e-2, rtol=2e-2)
    assert jnp.allclose(z, z_ref, atol=2e-2, rtol=2e-2)

    print("KERNEL_OK")
</pallas_src>

<mosaic_0001>
module attributes {stable_mosaic.version = 11 : i64} {
  func.func @encoder_kernel(%arg0: i32, %arg1: memref<8x128xbf16, #tpu.memory_space<vmem>>, %arg2: memref<128x128xbf16, #tpu.memory_space<vmem>>, %arg3: memref<128x256xbf16, #tpu.memory_space<vmem>>, %arg4: memref<8x128xf32, #tpu.memory_space<vmem>>, %arg5: memref<8x384xf32, #tpu.memory_space<vmem>>) attributes {dimension_semantics = [#tpu.dimension_semantics<parallel>], iteration_bounds = array<i64: 1>, scalar_prefetch = 0 : i64, scratch_operands = 0 : i64, tpu.core_type = #tpu.core_type<tc>, window_params = [{transform_indices = @transform_0, window_bounds = array<i64: 8, 128>}, {pipeline_mode = #tpu.pipeline_mode<synchronous>, transform_indices = @transform_1, window_bounds = array<i64: 128, 128>}, {pipeline_mode = #tpu.pipeline_mode<synchronous>, transform_indices = @transform_2, window_bounds = array<i64: 128, 256>}, {transform_indices = @transform_3, window_bounds = array<i64: 8, 128>}, {transform_indices = @transform_4, window_bounds = array<i64: 8, 384>}]} {
    %c0 = arith.constant 0 : index
    %c0_0 = arith.constant 0 : index
    %0 = vector.load %arg1[%c0, %c0_0] : memref<8x128xbf16, #tpu.memory_space<vmem>>, vector<8x128xbf16>
    %c0_1 = arith.constant 0 : index
    %c0_2 = arith.constant 0 : index
    %1 = vector.load %arg2[%c0_1, %c0_2] : memref<128x128xbf16, #tpu.memory_space<vmem>>, vector<128x128xbf16>
    %cst = arith.constant dense<0.000000e+00> : vector<8x128xf32>
    %2 = tpu.matmul %0, %1, %cst {dimension_numbers = #tpu.dot_dimension_numbers<[1], [0], [0], [1], [0, 0, 1, 1], [], []>} : vector<8x128xbf16>, vector<128x128xbf16>, vector<8x128xf32> -> vector<8x128xf32>
    %cst_3 = arith.constant 0.000000e+00 : f32
    %3 = vector.broadcast %cst_3 : f32 to vector<8x128xf32>
    %4 = arith.maximumf %2, %3 : vector<8x128xf32>
    %5 = arith.truncf %4 : vector<8x128xf32> to vector<8x128xbf16>
    %c0_4 = arith.constant 0 : index
    %c0_5 = arith.constant 0 : index
    %6 = vector.load %arg3[%c0_4, %c0_5] : memref<128x256xbf16, #tpu.memory_space<vmem>>, vector<128x256xbf16>
    %cst_6 = arith.constant dense<0.000000e+00> : vector<8x256xf32>
    %7 = tpu.matmul %5, %6, %cst_6 {dimension_numbers = #tpu.dot_dimension_numbers<[1], [0], [0], [1], [0, 0, 1, 1], [], []>} : vector<8x128xbf16>, vector<128x256xbf16>, vector<8x256xf32> -> vector<8x256xf32>
    %8 = vector.extract_strided_slice %7 {offsets = [0, 0], sizes = [8, 128], strides = [1, 1]} : vector<8x256xf32> to vector<8x128xf32>
    %9 = vector.extract_strided_slice %7 {offsets = [0, 128], sizes = [8, 128], strides = [1, 1]} : vector<8x256xf32> to vector<8x128xf32>
    %c0_7 = arith.constant 0 : index
    %c0_8 = arith.constant 0 : index
    %10 = vector.load %arg4[%c0_7, %c0_8] : memref<8x128xf32, #tpu.memory_space<vmem>>, vector<8x128xf32>
    %cst_9 = arith.constant 5.000000e-01 : f32
    %11 = vector.broadcast %cst_9 : f32 to vector<8x128xf32>
    %12 = arith.mulf %9, %11 : vector<8x128xf32>
    %13 = math.exp %12 : vector<8x128xf32>
    %14 = arith.mulf %10, %13 : vector<8x128xf32>
    %15 = arith.addf %8, %14 : vector<8x128xf32>
    %c0_10 = arith.constant 0 : index
    %c0_11 = arith.constant 0 : index
    %16 = vector.load %arg5[%c0_10, %c0_11] : memref<8x384xf32, #tpu.memory_space<vmem>>, vector<8x128xf32>
    tpu.vector_store %arg5[%c0_10, %c0_11], %15 {strides = array<i32>} : memref<8x384xf32, #tpu.memory_space<vmem>>, vector<8x128xf32>,
    %c0_12 = arith.constant 0 : index
    %c128 = arith.constant 128 : index
    %17 = vector.load %arg5[%c0_12, %c128] : memref<8x384xf32, #tpu.memory_space<vmem>>, vector<8x128xf32>
    tpu.vector_store %arg5[%c0_12, %c128], %8 {strides = array<i32>} : memref<8x384xf32, #tpu.memory_space<vmem>>, vector<8x128xf32>,
    %c0_13 = arith.constant 0 : index
    %c256 = arith.constant 256 : index
    %18 = vector.load %arg5[%c0_13, %c256] : memref<8x384xf32, #tpu.memory_space<vmem>>, vector<8x128xf32>
    tpu.vector_store %arg5[%c0_13, %c256], %9 {strides = array<i32>} : memref<8x384xf32, #tpu.memory_space<vmem>>, vector<8x128xf32>,
    return
  }
  func.func @transform_0(%arg0: i32) -> (i32, i32) {
    %c0_i32 = arith.constant 0 : i32
    %c0_i32_0 = arith.constant 0 : i32
    return %arg0, %c0_i32 : i32, i32
  }
  func.func @transform_1(%arg0: i32) -> (i32, i32) {
    %c0_i32 = arith.constant 0 : i32
    %c0_i32_0 = arith.constant 0 : i32
    %c0_i32_1 = arith.constant 0 : i32
    return %c0_i32, %c0_i32_0 : i32, i32
  }
  func.func @transform_2(%arg0: i32) -> (i32, i32) {
    %c0_i32 = arith.constant 0 : i32
    %c0_i32_0 = arith.constant 0 : i32
    %c0_i32_1 = arith.constant 0 : i32
    return %c0_i32, %c0_i32_0 : i32, i32
  }
  func.func @transform_3(%arg0: i32) -> (i32, i32) {
    %c0_i32 = arith.constant 0 : i32
    %c0_i32_0 = arith.constant 0 : i32
    return %arg0, %c0_i32 : i32, i32
  }
  func.func @transform_4(%arg0: i32) -> (i32, i32) {
    %c0_i32 = arith.constant 0 : i32
    %c0_i32_0 = arith.constant 0 : i32
    return %arg0, %c0_i32 : i32, i32
  }
}

</mosaic_0001>

<llo_original>
// kernel: tpu_custom_call.1
$region0: #{tpu_custom_call.1}
  #allocation0 [shape = 'u32[]', space=smem, size = 0x4, offset = 0x4, fixed_abs, tag = 'smem constant byte address 0x4 - core index']
  #allocation1 [shape = 'u32[144,128]{1,0:T(1,128)}', space=vmem, size = 0x12000, scoped, tag = 'internal scratch']
  %s0 = inlined_call_operand.hbm [shape: bf16[8,128], index: 0, kind: input, shape index: {}]
  %s1 = inlined_call_operand.hbm [shape: bf16[128,128], index: 1, kind: input, shape index: {}]
  %s2 = inlined_call_operand.hbm [shape: bf16[128,256], index: 2, kind: input, shape index: {}]
  %s3 = inlined_call_operand.vmem [shape: f32[8,128], index: 3, kind: input, shape index: {}]
  %s4 = inlined_call_operand.hbm [shape: f32[8,384], index: 4, kind: output, shape index: {}]
  %s5 = sld [smem:[#allocation0]]
  $region38: #{tpu_custom_call.1} parent=0
    _
  %s7 = ssub.s32 1, %s5
  %s8 = scalar_select 0, %s7, %s5
  $region1: #{tpu_custom_call.1} parent=0
    #allocation2 [shape = 'u8[2048]{0}', space=vmem, size = 0x800, scoped, tag = 'input window, operand 0, single buffered']
    #allocation3 [shape = 's32[1]{0}', space=sflag, size = 0x4, scoped, tag = 'scoped memory for tpu_custom_call.1']
    #allocation4 [shape = 's32[1]{0}', space=sflag, size = 0x4, scoped, tag = 'scoped memory for tpu_custom_call.1']
    #allocation5 [shape = 'u8[32768]{0}', space=vmem, size = 0x8000, scoped, tag = 'input window, operand 1, single buffered']
    #allocation6 [shape = 's32[1]{0}', space=sflag, size = 0x4, scoped, tag = 'scoped memory for tpu_custom_call.1']
    #allocation7 [shape = 'u8[65536]{0}', space=vmem, size = 0x10000, scoped, tag = 'input window, operand 2, single buffered']
    #allocation8 [shape = 'u8[12288]{0}', space=vmem, size = 0x3000, scoped, tag = 'output window, operand 0, single buffered']
    %9 = vsyncpa [#allocation3], 0
    %10 = vsyncpa [#allocation6], 0
    %11 = vsyncpa [#allocation4], 0
    // Predicated region
    $region2: #{tpu_custom_call.1} parent=1 // pred_check
      _
    $region3: #{tpu_custom_call.1} parent=1 // pred_check_branch
      %13 = sbr.rel (0) target = $region5
    $region4: #{tpu_custom_call.1} parent=1 // pred_region
      %s15 = ssub.s32 64, 64
      %16 = vsyncadd [#allocation3], %s15
      %s18 = sshll.u32 [#allocation2], 4
      %s19 = int_to_ptr.vmem [resolvable:$true] %s18
      %21 = dma.hbm_to_vmem [thread:$0]  %s0, 64, %s19, [#allocation3]
    $region5: #{tpu_custom_call.1} parent=1 // pred_fallthru
      _
    // Predicated region
    $region6: #{tpu_custom_call.1} parent=1 // pred_check
      _
    $region7: #{tpu_custom_call.1} parent=1 // pred_check_branch
      %23 = sbr.rel (0) target = $region9
    $region8: #{tpu_custom_call.1} parent=1 // pred_region
      %s25 = ssub.s32 1024, 1024
      %26 = vsyncadd [#allocation6], %s25
      %s27 = sshll.u32 [#allocation5], 4
      %s28 = int_to_ptr.vmem [resolvable:$true] %s27
      %33 = dma.hbm_to_vmem [thread:$0]  %s1, 1024, %s28, [#allocation6], 64, 64, 4
    $region9: #{tpu_custom_call.1} parent=1 // pred_fallthru
      _
    // Predicated region
    $region10: #{tpu_custom_call.1} parent=1 // pred_check
      _
    $region11: #{tpu_custom_call.1} parent=1 // pred_check_branch
      %35 = sbr.rel (0) target = $region13
    $region12: #{tpu_custom_call.1} parent=1 // pred_region
      %s37 = ssub.s32 2048, 2048
      %38 = vsyncadd [#allocation6], %s37
      %s39 = sshll.u32 [#allocation7], 4
      %s40 = int_to_ptr.vmem [resolvable:$true] %s39
      %45 = dma.hbm_to_vmem [thread:$0]  %s2, 2048, %s40, [#allocation6], 128, 128, 8
    $region13: #{tpu_custom_call.1} parent=1 // pred_fallthru
      _
    // Predicated region
    $region14: #{tpu_custom_call.1} parent=1 // pred_check
      _
    $region15: #{tpu_custom_call.1} parent=1 // pred_check_branch
      %47 = sbr.rel (0) target = $region17
    $region16: #{tpu_custom_call.1} parent=1 // pred_region
      _
    $region17: #{tpu_custom_call.1} parent=1 // pred_fallthru
      _
    // Predicated region
    $region18: #{tpu_custom_call.1} parent=1 // pred_check
      _
    $region19: #{tpu_custom_call.1} parent=1 // pred_check_branch
      %49 = sbr.rel (0) target = $region21
    $region20: #{tpu_custom_call.1} parent=1 // pred_region
      %50 = dma.done [#allocation3], 64
    $region21: #{tpu_custom_call.1} parent=1 // pred_fallthru
      _
    // Predicated region
    $region22: #{tpu_custom_call.1} parent=1 // pred_check
      _
    $region23: #{tpu_custom_call.1} parent=1 // pred_check_branch
      %52 = sbr.rel (0) target = $region25
    $region24: #{tpu_custom_call.1} parent=1 // pred_region
      %53 = dma.done [#allocation6], 1024
    $region25: #{tpu_custom_call.1} parent=1 // pred_fallthru
      _
    // Predicated region
    $region26: #{tpu_custom_call.1} parent=1 // pred_check
      _
    $region27: #{tpu_custom_call.1} parent=1 // pred_check_branch
      %55 = sbr.rel (0) target = $region29
    $region28: #{tpu_custom_call.1} parent=1 // pred_region
      %56 = dma.done [#allocation6], 2048
    $region29: #{tpu_custom_call.1} parent=1 // pred_fallthru
      _
    %v58 = vld [vmem:[#allocation2] sm:$0xf]
    %v59 = vld [vmem:[#allocation5] sm:$0xf]
    %v60 = vld [vmem:[#allocation5 + $0x4] sm:$0xf]
    %v61 = vld [vmem:[#allocation5 + $0x8] sm:$0xf]
    %v62 = vld [vmem:[#allocation5 + $0xc] sm:$0xf]
    %v63 = vld [vmem:[#allocation5 + $0x10] sm:$0xf]
    %v64 = vld [vmem:[#allocation5 + $0x14] sm:$0xf]
    %v65 = vld [vmem:[#allocation5 + $0x18] sm:$0xf]
    %v66 = vld [vmem:[#allocation5 + $0x1c] sm:$0xf]
    %v67 = vld [vmem:[#allocation5 + $0x20] sm:$0xf]
    %v68 = vld [vmem:[#allocation5 + $0x24] sm:$0xf]
    %v69 = vld [vmem:[#allocation5 + $0x28] sm:$0xf]
    %v70 = vld [vmem:[#allocation5 + $0x2c] sm:$0xf]
    %v71 = vld [vmem:[#allocation5 + $0x30] sm:$0xf]
    %v72 = vld [vmem:[#allocation5 + $0x34] sm:$0xf]
    %v73 = vld [vmem:[#allocation5 + $0x38] sm:$0xf]
    %v74 = vld [vmem:[#allocation5 + $0x3c] sm:$0xf]
    %v91 = vunpack.c.l.b16 %v59
    %v92 = vunpack.c.l.b16 %v60
    %v93 = vunpack.c.l.b16 %v61
    %v94 = vunpack.c.l.b16 %v62
    %v95 = vunpack.c.l.b16 %v63
    %v96 = vunpack.c.l.b16 %v64
    %v97 = vunpack.c.l.b16 %v65
    %v98 = vunpack.c.l.b16 %v66
    %v99 = vunpack.c.l.b16 %v67
    %v100 = vunpack.c.l.b16 %v68
    %v101 = vunpack.c.l.b16 %v69
    %v102 = vunpack.c.l.b16 %v70
    %v103 = vunpack.c.l.b16 %v71
    %v104 = vunpack.c.l.b16 %v72
    %v105 = vunpack.c.l.b16 %v73
    %v106 = vunpack.c.l.b16 %v74
    %v107 = vpack.c.b16 %v92, %v91
    %v108 = vpack.c.b16 %v94, %v93
    %v109 = vpack.c.b16 %v96, %v95
    %v110 = vpack.c.b16 %v98, %v97
    %v111 = vpack.c.b16 %v100, %v99
    %v112 = vpack.c.b16 %v102, %v101
    %v113 = vpack.c.b16 %v104, %v103
    %v114 = vpack.c.b16 %v106, %v105
    %123 = vmatprep.subr.bf16.mxu0 0
    %124 = vmatpush1.bf16.msra.mxu0 %v107
    %125 = vmatprep.subr.bf16.mxu0 0
    %126 = vmatpush1.bf16.msra.mxu0 %v108
    %127 = vmatprep.subr.bf16.mxu0 0
    %128 = vmatpush1.bf16.msra.mxu0 %v109
    %129 = vmatprep.subr.bf16.mxu0 0
    %130 = vmatpush1.bf16.msra.mxu0 %v110
    %131 = vmatprep.subr.bf16.mxu0 0
    %132 = vmatpush1.bf16.msra.mxu0 %v111
    %133 = vmatprep.subr.bf16.mxu0 0
    %134 = vmatpush1.bf16.msra.mxu0 %v112
    %135 = vmatprep.subr.bf16.mxu0 0
    %136 = vmatpush1.bf16.msra.mxu0 %v113
    %137 = vmatprep.subr.bf16.mxu0 0
    %138 = vmatpush1.bf16.msra.mxu0 %v114
    %139 = vmatprep.subr.bf16.mxu0 0
    %140 = vmatpush1.bf16.msra.mxu0 0
    %141 = vmatprep.subr.bf16.mxu0 0
    %142 = vmatpush1.bf16.msra.mxu0 0
    %143 = vmatprep.subr.bf16.mxu0 0
    %144 = vmatpush1.bf16.msra.mxu0 0
    %145 = vmatprep.subr.bf16.mxu0 0
    %146 = vmatpush1.bf16.msra.mxu0 0
    %147 = vmatprep.subr.bf16.mxu0 0
    %148 = vmatpush1.bf16.msra.mxu0 0
    %149 = vmatprep.subr.bf16.mxu0 0
    %150 = vmatpush1.bf16.msra.mxu0 0
    %151 = vmatprep.subr.bf16.mxu0 0
    %152 = vmatpush1.bf16.msra.mxu0 0
    %153 = vmatprep.subr.bf16.mxu0 0
    %154 = vmatpush1.bf16.msra.mxu0 0
    %155 = vmatprep.mubr.bf16.mxu0 0
    %156 = vmatmul.mubr.bf16.gmra.mrb[0].mxu0 %v58
    %v157 = vpop.f32.mrb[0].mxu0
    %v158 = vadd.f32 0.0, %v157
    %v159 = vpop.f32.mrb[0].mxu0
    %v160 = vpop.f32.mrb[0].mxu0
    %v161 = vpop.f32.mrb[0].mxu0
    %162 = vdwg.mxu0
    %v163 = vmax.f32 %v158, 0.0
    %v164 = vpack.c.bf16 %v163, %v163
    %v165 = vld [vmem:[#allocation7] sm:$0xff]
    %v166 = vld [vmem:[#allocation7 + $0x8] sm:$0xff]
    %v167 = vld [vmem:[#allocation7 + $0x10] sm:$0xff]
    %v168 = vld [vmem:[#allocation7 + $0x18] sm:$0xff]
    %v169 = vld [vmem:[#allocation7 + $0x20] sm:$0xff]
    %v170 = vld [vmem:[#allocation7 + $0x28] sm:$0xff]
    %v171 = vld [vmem:[#allocation7 + $0x30] sm:$0xff]
    %v172 = vld [vmem:[#allocation7 + $0x38] sm:$0xff]
    %v173 = vld [vmem:[#allocation7 + $0x40] sm:$0xff]
    %v174 = vld [vmem:[#allocation7 + $0x48] sm:$0xff]
    %v175 = vld [vmem:[#allocation7 + $0x50] sm:$0xff]
    %v176 = vld [vmem:[#allocation7 + $0x58] sm:$0xff]
    %v177 = vld [vmem:[#allocation7 + $0x60] sm:$0xff]
    %v178 = vld [vmem:[#allocation7 + $0x68] sm:$0xff]
    %v179 = vld [vmem:[#allocation7 + $0x70] sm:$0xff]
    %v180 = vld [vmem:[#allocation7 + $0x78] sm:$0xff]
    %v197 = vunpack.c.l.b16 %v165
    %v198 = vunpack.c.h.b16 %v165
    %v199 = vunpack.c.l.b16 %v166
    %v200 = vunpack.c.h.b16 %v166
    %v201 = vunpack.c.l.b16 %v167
    %v202 = vunpack.c.h.b16 %v167
    %v203 = vunpack.c.l.b16 %v168
    %v204 = vunpack.c.h.b16 %v168
    %v205 = vunpack.c.l.b16 %v169
    %v206 = vunpack.c.h.b16 %v169
    %v207 = vunpack.c.l.b16 %v170
    %v208 = vunpack.c.h.b16 %v170
    %v209 = vunpack.c.l.b16 %v171
    %v210 = vunpack.c.h.b16 %v171
    %v211 = vunpack.c.l.b16 %v172
    %v212 = vunpack.c.h.b16 %v172
    %v213 = vunpack.c.l.b16 %v173
    %v214 = vunpack.c.h.b16 %v173
    %v215 = vunpack.c.l.b16 %v174
    %v216 = vunpack.c.h.b16 %v174
    %v217 = vunpack.c.l.b16 %v175
    %v218 = vunpack.c.h.b16 %v175
    %v219 = vunpack.c.l.b16 %v176
    %v220 = vunpack.c.h.b16 %v176
    %v221 = vunpack.c.l.b16 %v177
    %v222 = vunpack.c.h.b16 %v177
    %v223 = vunpack.c.l.b16 %v178
    %v224 = vunpack.c.h.b16 %v178
    %v225 = vunpack.c.l.b16 %v179
    %v226 = vunpack.c.h.b16 %v179
    %v227 = vunpack.c.l.b16 %v180
    %v228 = vunpack.c.h.b16 %v180
    %v229 = vpack.c.b16 %v199, %v197
    %v230 = vpack.c.b16 %v200, %v198
    %v231 = vpack.c.b16 %v203, %v201
    %v232 = vpack.c.b16 %v204, %v202
    %v233 = vpack.c.b16 %v207, %v205
    %v234 = vpack.c.b16 %v208, %v206
    %v235 = vpack.c.b16 %v211, %v209
    %v236 = vpack.c.b16 %v212, %v210
    %v237 = vpack.c.b16 %v215, %v213
    %v238 = vpack.c.b16 %v216, %v214
    %v239 = vpack.c.b16 %v219, %v217
    %v240 = vpack.c.b16 %v220, %v218
    %v241 = vpack.c.b16 %v223, %v221
    %v242 = vpack.c.b16 %v224, %v222
    %v243 = vpack.c.b16 %v227, %v225
    %v244 = vpack.c.b16 %v228, %v226
    %261 = vmatprep.subr.bf16.mxu0 %v230
    %262 = vmatpush1.bf16.msra.mxu0 %v229
    %263 = vmatprep.subr.bf16.mxu0 %v232
    %264 = vmatpush1.bf16.msra.mxu0 %v231
    %265 = vmatprep.subr.bf16.mxu0 %v234
    %266 = vmatpush1.bf16.msra.mxu0 %v233
    %267 = vmatprep.subr.bf16.mxu0 %v236
    %268 = vmatpush1.bf16.msra.mxu0 %v235
    %269 = vmatprep.subr.bf16.mxu0 %v238
    %270 = vmatpush1.bf16.msra.mxu0 %v237
    %271 = vmatprep.subr.bf16.mxu0 %v240
    %272 = vmatpush1.bf16.msra.mxu0 %v239
    %273 = vmatprep.subr.bf16.mxu0 %v242
    %274 = vmatpush1.bf16.msra.mxu0 %v241
    %275 = vmatprep.subr.bf16.mxu0 %v244
    %276 = vmatpush1.bf16.msra.mxu0 %v243
    %277 = vmatprep.subr.bf16.mxu0 0
    %278 = vmatpush1.bf16.msra.mxu0 0
    %279 = vmatprep.subr.bf16.mxu0 0
    %280 = vmatpush1.bf16.msra.mxu0 0
    %281 = vmatprep.subr.bf16.mxu0 0
    %282 = vmatpush1.bf16.msra.mxu0 0
    %283 = vmatprep.subr.bf16.mxu0 0
    %284 = vmatpush1.bf16.msra.mxu0 0
    %285 = vmatprep.subr.bf16.mxu0 0
    %286 = vmatpush1.bf16.msra.mxu0 0
    %287 = vmatprep.subr.bf16.mxu0 0
    %288 = vmatpush1.bf16.msra.mxu0 0
    %289 = vmatprep.subr.bf16.mxu0 0
    %290 = vmatpush1.bf16.msra.mxu0 0
    %291 = vmatprep.subr.bf16.mxu0 0
    %292 = vmatpush1.bf16.msra.mxu0 0
    %293 = vmatprep.mubr.bf16.mxu0 0
    %294 = vmatmul.mubr.bf16.gmra.mrb[0].mxu0 %v164
    %v295 = vpop.f32.mrb[0].mxu0
    %v296 = vadd.f32 0.0, %v295
    %v297 = vpop.f32.mrb[0].mxu0
    %v298 = vadd.f32 0.0, %v297
    %v299 = vpop.f32.mrb[0].mxu0
    %v300 = vpop.f32.mrb[0].mxu0
    %301 = vdwg.mxu0
    %v302 = vld [vmem:[%s3] sm:$0xff]
    %v303 = vmul.f32 %v298, 0.5
    %v304 = vmul.f32 %v303, 1.442695
    %v305 = vpow.pop %v304
    %v306 = vmul.f32 %v302, %v305
    %v307 = vadd.f32 %v296, %v306
    %308 = vst [vmem:[#allocation8] sm:$0xff] %v307
    %309 = vst [vmem:[#allocation8 + $0x8] sm:$0xff] %v296
    %310 = vst [vmem:[#allocation8 + $0x10] sm:$0xff] %v298
    // Predicated region
    $region30: #{tpu_custom_call.1} parent=1 // pred_check
      _
    $region31: #{tpu_custom_call.1} parent=1 // pred_check_branch
      %312 = sbr.rel (0) target = $region33
    $region32: #{tpu_custom_call.1} parent=1 // pred_region
      %s314 = ssub.s32 384, 384
      %315 = vsyncadd [#allocation4], %s314
      %s317 = sshll.u32 [#allocation8], 4
      %s318 = int_to_ptr.vmem [resolvable:$true] %s317
      %320 = dma.vmem_to_hbm [thread:$0]  %s318, 384, %s4, [#allocation4]
    $region33: #{tpu_custom_call.1} parent=1 // pred_fallthru
      _
    // Predicated region
    $region34: #{tpu_custom_call.1} parent=1 // pred_check
      _
    $region35: #{tpu_custom_call.1} parent=1 // pred_check_branch
      %322 = sbr.rel (0) target = $region37
    $region36: #{tpu_custom_call.1} parent=1 // pred_region
      %323 = dma.done [#allocation4], 384
    $region37: #{tpu_custom_call.1} parent=1 // pred_fallthru
      _
    %324 = vsyncpa [#allocation3], 1
    %325 = vsyncpa [#allocation6], 1
    %326 = vsyncpa [#allocation4], 1

</llo_original>
